<compile_context>
chip_gen: v6e
topology: v6e:2x2x1
jax: 0.10.0
libtpu: 0.0.40
codegen_flags: <defaults>
</compile_context>

<pallas_src>
import functools

import jax
import jax.numpy as jnp
from jax import lax
from jax.experimental import pallas as pl
from jax.experimental.pallas import tpu as pltpu


def _sdpa_flash_kernel(x1_ref, x2_ref, o_ref, m_sc, l_sc, acc_sc, *, scale):
    """One (batch, M-tile, N-tile) grid step of online-softmax attention.

    x1_ref: (tm, D), x2_ref: (tn, D), o_ref: (tm, D)  — batch dim squeezed.
    m_sc/l_sc: (tm, 1) f32, acc_sc: (tm, D) f32 — persist across the N axis.
    """
    kv = pl.program_id(2)

    @pl.when(kv == 0)
    def _():
        m_sc[...] = jnp.full_like(m_sc, -jnp.inf)
        l_sc[...] = jnp.zeros_like(l_sc)
        acc_sc[...] = jnp.zeros_like(acc_sc)

    # Scale in f32 (folded into the smaller operand), cast only at MXU inputs.
    q = (x1_ref[...] * scale).astype(jnp.bfloat16)        # (tm, D)
    k = x2_ref[...].astype(jnp.bfloat16)                   # (tn, D)

    # s = q @ k^T without materializing k.T: contract the last dim of both.
    s = lax.dot_general(
        q, k,
        dimension_numbers=(((1,), (1,)), ((), ())),
        preferred_element_type=jnp.float32,
    )                                                      # (tm, tn) f32

    # Online softmax update.
    m_prev = m_sc[...]
    m_new = jnp.maximum(m_prev, jnp.max(s, axis=-1, keepdims=True))
    alpha = jnp.exp(m_prev - m_new)                        # (tm, 1)
    p = jnp.exp(s - m_new)                                 # (tm, tn) f32
    l_sc[...] = alpha * l_sc[...] + jnp.sum(p, axis=-1, keepdims=True)
    acc_sc[...] = alpha * acc_sc[...] + jnp.dot(
        p.astype(jnp.bfloat16), k, preferred_element_type=jnp.float32
    )                                                      # (tm, D) f32
    m_sc[...] = m_new

    # dropout with p=0.0 is the identity — nothing to do.

    @pl.when(kv == pl.num_programs(2) - 1)
    def _():
        # Exact normalization over only (tm, 1) denominators (perf-neutral).
        o_ref[...] = (acc_sc[...] / l_sc[...]).astype(o_ref.dtype)


def _pick_tile(dim, candidates):
    for c in candidates:
        if dim >= c and dim % c == 0:
            return c
    return dim


def sdpa_pallas(x1, x2, scale_factor=0.2):
    """x1: (B, M, D) f32, x2: (B, N, D) f32 -> (B, M, D) f32."""
    B, M, D = x1.shape
    B2, N, D2 = x2.shape
    assert B == B2 and D == D2, "inconsistent shapes for matmul chain"

    # M tile: 256 fills the 2x256^2 MXU on v6e/v7x; 128 is the sweet spot on
    # v5e's 4x128^2 MXU; fall back to full M when M is small (as here).
    tm = _pick_tile(M, (256, 128))
    # N tile: bounds the K/V stream VMEM footprint and the (tm, tn) logits.
    tn = _pick_tile(N, (512, 256, 128))

    kernel = functools.partial(_sdpa_flash_kernel, scale=scale_factor)

    # Rough per-step VMEM footprint (f32 inputs, double-buffered BlockSpecs
    # plus persistent scratch); raise the scoped-VMEM limit only if needed,
    # leaving ~8 MiB headroom on v7x's 64 MiB physical VMEM.
    bytes_f32 = 4
    vmem_need = (
        2 * tm * D * bytes_f32        # x1 tile, double buffered
        + 2 * tn * D * bytes_f32      # x2 tile, double buffered
        + 2 * tm * D * bytes_f32      # out tile, double buffered
        + (tm * D + 2 * tm) * bytes_f32  # acc + m + l scratch
    )
    cp_kwargs = {"dimension_semantics": ("parallel", "parallel", "arbitrary")}
    if vmem_need > (12 << 20):
        cp_kwargs["vmem_limit_bytes"] = min(2 * vmem_need, 56 << 20)

    cost = pl.CostEstimate(
        flops=4 * B * M * N * D,            # two matmuls
        transcendentals=B * M * N,          # exp
        bytes_accessed=bytes_f32 * (B * M * D + B * N * D + B * M * D),
    )

    return pl.pallas_call(
        kernel,
        out_shape=jax.ShapeDtypeStruct((B, M, D), x1.dtype),
        grid_spec=pltpu.PrefetchScalarGridSpec(
            num_scalar_prefetch=0,
            grid=(B, M // tm, N // tn),
            in_specs=[
                pl.BlockSpec((None, tm, D), lambda b, i, k: (b, i, 0)),
                pl.BlockSpec((None, tn, D), lambda b, i, k: (b, k, 0)),
            ],
            out_specs=pl.BlockSpec((None, tm, D), lambda b, i, k: (b, i, 0)),
            scratch_shapes=[
                pltpu.VMEM((tm, 1), jnp.float32),   # running max m
                pltpu.VMEM((tm, 1), jnp.float32),   # running denom l
                pltpu.VMEM((tm, D), jnp.float32),   # unnormalized output acc
            ],
        ),
        compiler_params=pltpu.CompilerParams(**cp_kwargs),
        cost_estimate=cost,
    )(x1, x2)


def sdpa_ref(x1, x2, scale_factor=0.2):
    qk = jnp.einsum("bmd,bnd->bmn", x1, x2) * scale_factor
    p = jax.nn.softmax(qk, axis=-1)
    return jnp.einsum("bmn,bnd->bmd", p, x2)


if __name__ == "__main__":
    key = jax.random.PRNGKey(0)
    k1, k2 = jax.random.split(key)

    # Small, self-consistent shapes implied by the module's forward
    # (the literal (1,64,256)x(1,256,512) pair cannot feed this matmul chain).
    B, M, N, D = 1, 64, 256, 256
    x1 = jax.random.normal(k1, (B, M, D), dtype=jnp.float32)
    x2 = jax.random.normal(k2, (B, N, D), dtype=jnp.float32)

    out = sdpa_pallas(x1, x2, scale_factor=0.2)
    jax.block_until_ready(out)

    ref = sdpa_ref(x1, x2, scale_factor=0.2)
    assert out.shape == (B, M, D)
    # bf16 MXU operands (f32 accumulation) => ~1e-2 relative accuracy vs the
    # f32 reference; check the relative Frobenius error, which is robust.
    rel_err = jnp.linalg.norm(out - ref) / jnp.linalg.norm(ref)
    assert bool(rel_err < 2e-2), f"mismatch vs reference: rel_err={rel_err}"

    print("KERNEL_OK")
</pallas_src>

<mosaic_0001>
module attributes {stable_mosaic.version = 11 : i64} {
  func.func @_sdpa_flash_kernel(%arg0: i32, %arg1: i32, %arg2: i32, %arg3: memref<1x64x256xf32, #tpu.memory_space<vmem>>, %arg4: memref<1x256x256xf32, #tpu.memory_space<vmem>>, %arg5: memref<1x64x256xf32, #tpu.memory_space<vmem>>, %arg6: memref<64x1xf32, #tpu.memory_space<vmem>>, %arg7: memref<64x1xf32, #tpu.memory_space<vmem>>, %arg8: memref<64x256xf32, #tpu.memory_space<vmem>>) attributes {dimension_semantics = [#tpu.dimension_semantics<parallel>, #tpu.dimension_semantics<parallel>, #tpu.dimension_semantics<arbitrary>], iteration_bounds = array<i64: 1, 1, 1>, scalar_prefetch = 0 : i64, scratch_operands = 3 : i64, tpu.core_type = #tpu.core_type<tc>, window_params = [{transform_indices = @transform_0, window_bounds = array<i64: 1, 64, 256>}, {transform_indices = @transform_1, window_bounds = array<i64: 1, 256, 256>}, {transform_indices = @transform_2, window_bounds = array<i64: 1, 64, 256>}]} {
    %c0_i32 = arith.constant 0 : i32
    %0 = arith.cmpi eq, %arg2, %c0_i32 : i32
    %1 = arith.extui %0 : i1 to i32
    %c0_i32_0 = arith.constant 0 : i32
    %2 = arith.cmpi ne, %1, %c0_i32_0 : i32
    scf.if %2 {
      %cst_24 = arith.constant 0xFF800000 : f32
      %38 = vector.broadcast %cst_24 : f32 to vector<64x1xf32>
      %c0_25 = arith.constant 0 : index
      %c0_26 = arith.constant 0 : index
      %39 = vector.load %arg6[%c0_25, %c0_26] : memref<64x1xf32, #tpu.memory_space<vmem>>, vector<64x1xf32>
      tpu.vector_store %arg6[%c0_25, %c0_26], %38 {strides = array<i32>} : memref<64x1xf32, #tpu.memory_space<vmem>>, vector<64x1xf32>,
      %cst_27 = arith.constant 0.000000e+00 : f32
      %40 = vector.broadcast %cst_27 : f32 to vector<64x1xf32>
      %c0_28 = arith.constant 0 : index
      %c0_29 = arith.constant 0 : index
      %41 = vector.load %arg7[%c0_28, %c0_29] : memref<64x1xf32, #tpu.memory_space<vmem>>, vector<64x1xf32>
      tpu.vector_store %arg7[%c0_28, %c0_29], %40 {strides = array<i32>} : memref<64x1xf32, #tpu.memory_space<vmem>>, vector<64x1xf32>,
      %cst_30 = arith.constant 0.000000e+00 : f32
      %42 = vector.broadcast %cst_30 : f32 to vector<64x256xf32>
      %c0_31 = arith.constant 0 : index
      %c0_32 = arith.constant 0 : index
      %43 = vector.load %arg8[%c0_31, %c0_32] : memref<64x256xf32, #tpu.memory_space<vmem>>, vector<64x256xf32>
      tpu.vector_store %arg8[%c0_31, %c0_32], %42 {strides = array<i32>} : memref<64x256xf32, #tpu.memory_space<vmem>>, vector<64x256xf32>,
    } else {
    }
    %c0 = arith.constant 0 : index
    %c0_1 = arith.constant 0 : index
    %c0_2 = arith.constant 0 : index
    %3 = vector.load %arg3[%c0, %c0_1, %c0_2] : memref<1x64x256xf32, #tpu.memory_space<vmem>>, vector<1x64x256xf32>
    %4 = vector.shape_cast %3 : vector<1x64x256xf32> to vector<64x256xf32>
    %cst = arith.constant 2.000000e-01 : f32
    %5 = vector.broadcast %cst : f32 to vector<64x256xf32>
    %6 = arith.mulf %4, %5 : vector<64x256xf32>
    %7 = arith.truncf %6 : vector<64x256xf32> to vector<64x256xbf16>
    %c0_3 = arith.constant 0 : index
    %c0_4 = arith.constant 0 : index
    %c0_5 = arith.constant 0 : index
    %8 = vector.load %arg4[%c0_3, %c0_4, %c0_5] : memref<1x256x256xf32, #tpu.memory_space<vmem>>, vector<1x256x256xf32>
    %9 = vector.shape_cast %8 : vector<1x256x256xf32> to vector<256x256xf32>
    %10 = arith.truncf %9 : vector<256x256xf32> to vector<256x256xbf16>
    %cst_6 = arith.constant dense<0.000000e+00> : vector<64x256xf32>
    %11 = tpu.matmul %7, %10, %cst_6 {dimension_numbers = #tpu.dot_dimension_numbers<[1], [1], [0], [0], [0, 0, 1, 0], [], []>} : vector<64x256xbf16>, vector<256x256xbf16>, vector<64x256xf32> -> vector<64x256xf32>
    %c0_7 = arith.constant 0 : index
    %c0_8 = arith.constant 0 : index
    %12 = vector.load %arg6[%c0_7, %c0_8] : memref<64x1xf32, #tpu.memory_space<vmem>>, vector<64x1xf32>
    %cst_9 = arith.constant dense<0xFF800000> : vector<64xf32>
    %13 = vector.multi_reduction <maximumf>, %11, %cst_9 [1] : vector<64x256xf32> to vector<64xf32>
    %14 = vector.shape_cast %13 : vector<64xf32> to vector<64x1xf32>
    %15 = arith.maximumf %12, %14 : vector<64x1xf32>
    %16 = arith.subf %12, %15 : vector<64x1xf32>
    %17 = math.exp %16 : vector<64x1xf32>
    %18 = vector.broadcast %15 : vector<64x1xf32> to vector<64x256xf32>
    %19 = arith.subf %11, %18 : vector<64x256xf32>
    %20 = math.exp %19 : vector<64x256xf32>
    %c0_10 = arith.constant 0 : index
    %c0_11 = arith.constant 0 : index
    %21 = vector.load %arg7[%c0_10, %c0_11] : memref<64x1xf32, #tpu.memory_space<vmem>>, vector<64x1xf32>
    %22 = arith.mulf %17, %21 : vector<64x1xf32>
    %cst_12 = arith.constant dense<0.000000e+00> : vector<64xf32>
    %23 = vector.multi_reduction <add>, %20, %cst_12 [1] : vector<64x256xf32> to vector<64xf32>
    %24 = vector.shape_cast %23 : vector<64xf32> to vector<64x1xf32>
    %25 = arith.addf %22, %24 : vector<64x1xf32>
    %c0_13 = arith.constant 0 : index
    %c0_14 = arith.constant 0 : index
    %26 = vector.load %arg7[%c0_13, %c0_14] : memref<64x1xf32, #tpu.memory_space<vmem>>, vector<64x1xf32>
    tpu.vector_store %arg7[%c0_13, %c0_14], %25 {strides = array<i32>} : memref<64x1xf32, #tpu.memory_space<vmem>>, vector<64x1xf32>,
    %c0_15 = arith.constant 0 : index
    %c0_16 = arith.constant 0 : index
    %27 = vector.load %arg8[%c0_15, %c0_16] : memref<64x256xf32, #tpu.memory_space<vmem>>, vector<64x256xf32>
    %28 = vector.broadcast %17 : vector<64x1xf32> to vector<64x256xf32>
    %29 = arith.mulf %28, %27 : vector<64x256xf32>
    %30 = arith.truncf %20 : vector<64x256xf32> to vector<64x256xbf16>
    %cst_17 = arith.constant dense<0.000000e+00> : vector<64x256xf32>
    %31 = tpu.matmul %30, %10, %cst_17 {dimension_numbers = #tpu.dot_dimension_numbers<[1], [0], [0], [1], [0, 0, 1, 1], [], []>} : vector<64x256xbf16>, vector<256x256xbf16>, vector<64x256xf32> -> vector<64x256xf32>
    %32 = arith.addf %29, %31 : vector<64x256xf32>
    %c0_18 = arith.constant 0 : index
    %c0_19 = arith.constant 0 : index
    %33 = vector.load %arg8[%c0_18, %c0_19] : memref<64x256xf32, #tpu.memory_space<vmem>>, vector<64x256xf32>
    tpu.vector_store %arg8[%c0_18, %c0_19], %32 {strides = array<i32>} : memref<64x256xf32, #tpu.memory_space<vmem>>, vector<64x256xf32>,
    %c0_20 = arith.constant 0 : index
    %c0_21 = arith.constant 0 : index
    %34 = vector.load %arg6[%c0_20, %c0_21] : memref<64x1xf32, #tpu.memory_space<vmem>>, vector<64x1xf32>
    tpu.vector_store %arg6[%c0_20, %c0_21], %15 {strides = array<i32>} : memref<64x1xf32, #tpu.memory_space<vmem>>, vector<64x1xf32>,
    %c0_i32_22 = arith.constant 0 : i32
    %35 = arith.cmpi eq, %arg2, %c0_i32_22 : i32
    %36 = arith.extui %35 : i1 to i32
    %c0_i32_23 = arith.constant 0 : i32
    %37 = arith.cmpi ne, %36, %c0_i32_23 : i32
    scf.if %37 {
      %c0_24 = arith.constant 0 : index
      %c0_25 = arith.constant 0 : index
      %38 = vector.load %arg8[%c0_24, %c0_25] : memref<64x256xf32, #tpu.memory_space<vmem>>, vector<64x256xf32>
      %c0_26 = arith.constant 0 : index
      %c0_27 = arith.constant 0 : index
      %39 = vector.load %arg7[%c0_26, %c0_27] : memref<64x1xf32, #tpu.memory_space<vmem>>, vector<64x1xf32>
      %40 = vector.broadcast %39 : vector<64x1xf32> to vector<64x256xf32>
      %41 = arith.divf %38, %40 : vector<64x256xf32>
      %c0_28 = arith.constant 0 : index
      %c0_29 = arith.constant 0 : index
      %c0_30 = arith.constant 0 : index
      %42 = vector.load %arg5[%c0_28, %c0_29, %c0_30] : memref<1x64x256xf32, #tpu.memory_space<vmem>>, vector<1x64x256xf32>
      %43 = vector.shape_cast %42 : vector<1x64x256xf32> to vector<64x256xf32>
      %44 = vector.shape_cast %41 : vector<64x256xf32> to vector<1x64x256xf32>
      tpu.vector_store %arg5[%c0_28, %c0_29, %c0_30], %44 {strides = array<i32>} : memref<1x64x256xf32, #tpu.memory_space<vmem>>, vector<1x64x256xf32>,
    } else {
    }
    return
  }
  func.func @transform_0(%arg0: i32, %arg1: i32, %arg2: i32) -> (i32, i32, i32) {
    %c0_i32 = arith.constant 0 : i32
    %c0_i32_0 = arith.constant 0 : i32
    return %arg0, %arg1, %c0_i32 : i32, i32, i32
  }
  func.func @transform_1(%arg0: i32, %arg1: i32, %arg2: i32) -> (i32, i32, i32) {
    %c0_i32 = arith.constant 0 : i32
    %c0_i32_0 = arith.constant 0 : i32
    return %arg0, %arg2, %c0_i32 : i32, i32, i32
  }
  func.func @transform_2(%arg0: i32, %arg1: i32, %arg2: i32) -> (i32, i32, i32) {
    %c0_i32 = arith.constant 0 : i32
    %c0_i32_0 = arith.constant 0 : i32
    return %arg0, %arg1, %c0_i32 : i32, i32, i32
  }
}

</mosaic_0001>

<llo_original>
// kernel: tpu_custom_call.1
$region0: #{tpu_custom_call.1}
  #allocation0 [shape = 'u32[]', space=smem, size = 0x4, offset = 0x4, fixed_abs, tag = 'smem constant byte address 0x4 - core index']
  #allocation1 [shape = 'u32[144,128]{1,0:T(1,128)}', space=vmem, size = 0x12000, scoped, tag = 'internal scratch']
  #allocation2 [shape = 'f32[64,1]{1,0:T(8,128)}', space=vmem, size = 0x8000, scoped, tag = 'scratch operand']
  #allocation3 [shape = 'f32[64,1]{1,0:T(8,128)}', space=vmem, size = 0x8000, scoped, tag = 'scratch operand']
  #allocation4 [shape = 'f32[64,256]{1,0:T(8,128)}', space=vmem, size = 0x10000, scoped, tag = 'scratch operand']
  %s0 = inlined_call_operand.hbm [shape: f32[1,64,256], index: 0, kind: input, shape index: {}]
  %s1 = inlined_call_operand.hbm [shape: f32[1,256,256], index: 1, kind: input, shape index: {}]
  %s2 = inlined_call_operand.hbm [shape: f32[1,64,256], index: 2, kind: output, shape index: {}]
  %s3 = sld [smem:[#allocation0]]
  $region34: #{tpu_custom_call.1} parent=0
    _
  %s5 = ssub.s32 1, %s3
  %s6 = scalar_select 0, %s5, %s3
  $region1: #{tpu_custom_call.1} parent=0
    #allocation5 [shape = 'u8[65536]{0}', space=vmem, size = 0x10000, scoped, tag = 'input window, operand 0, single buffered']
    #allocation6 [shape = 's32[1]{0}', space=sflag, size = 0x4, scoped, tag = 'scoped memory for tpu_custom_call.1']
    #allocation7 [shape = 's32[1]{0}', space=sflag, size = 0x4, scoped, tag = 'scoped memory for tpu_custom_call.1']
    #allocation8 [shape = 'u8[262144]{0}', space=vmem, size = 0x40000, scoped, tag = 'input window, operand 1, single buffered']
    #allocation9 [shape = 's32[1]{0}', space=sflag, size = 0x4, scoped, tag = 'scoped memory for tpu_custom_call.1']
    #allocation10 [shape = 'u8[65536]{0}', space=vmem, size = 0x10000, scoped, tag = 'output window, operand 0, single buffered']
    %7 = vsyncpa [#allocation6], 0
    %8 = vsyncpa [#allocation9], 0
    %9 = vsyncpa [#allocation7], 0
    // Predicated region
    $region2: #{tpu_custom_call.1} parent=1 // pred_check
      _
    $region3: #{tpu_custom_call.1} parent=1 // pred_check_branch
      %11 = sbr.rel (0) target = $region5
    $region4: #{tpu_custom_call.1} parent=1 // pred_region
      %s13 = ssub.s32 2048, 2048
      %14 = vsyncadd [#allocation6], %s13
      %s15 = sshll.u32 [#allocation5], 4
      %s16 = int_to_ptr.vmem [resolvable:$true] %s15
      %21 = dma.hbm_to_vmem [thread:$0]  %s0, 2048, %s16, [#allocation6], 256, 256, 16
    $region5: #{tpu_custom_call.1} parent=1 // pred_fallthru
      _
    // Predicated region
    $region6: #{tpu_custom_call.1} parent=1 // pred_check
      _
    $region7: #{tpu_custom_call.1} parent=1 // pred_check_branch
      %23 = sbr.rel (0) target = $region9
    $region8: #{tpu_custom_call.1} parent=1 // pred_region
      %s25 = ssub.s32 8192, 8192
      %26 = vsyncadd [#allocation9], %s25
      %s27 = sshll.u32 [#allocation8], 4
      %s28 = int_to_ptr.vmem [resolvable:$true] %s27
      %33 = dma.hbm_to_vmem [thread:$0]  %s1, 8192, %s28, [#allocation9], 256, 256, 16
    $region9: #{tpu_custom_call.1} parent=1 // pred_fallthru
      _
    // Predicated region
    $region10: #{tpu_custom_call.1} parent=1 // pred_check
      _
    $region11: #{tpu_custom_call.1} parent=1 // pred_check_branch
      %35 = sbr.rel (0) target = $region13
    $region12: #{tpu_custom_call.1} parent=1 // pred_region
      %36 = dma.done [#allocation6], 2048
    $region13: #{tpu_custom_call.1} parent=1 // pred_fallthru
      _
    // Predicated region
    $region14: #{tpu_custom_call.1} parent=1 // pred_check
      _
    $region15: #{tpu_custom_call.1} parent=1 // pred_check_branch
      %38 = sbr.rel (0) target = $region17
    $region16: #{tpu_custom_call.1} parent=1 // pred_region
      %39 = dma.done [#allocation9], 8192
    $region17: #{tpu_custom_call.1} parent=1 // pred_fallthru
      _
    %p40 = scmp.eq.s32.totalorder 0, 0
    // Predicated region
    $region18: #{tpu_custom_call.1} parent=1 // pred_check
      %p41 = pneg %p40
    $region19: #{tpu_custom_call.1} parent=1 // pred_check_branch
      %43 = sbr.rel (%p41) target = $region21
    $region20: #{tpu_custom_call.1} parent=1 // pred_region
      %vm44 = vcmask 7168
      %45 = vst.msk [vmem:[#allocation2] sm:$0xff] %vm44, -inf
      %46 = vst.msk [vmem:[#allocation2 + $0x8] sm:$0xff] %vm44, -inf
      %47 = vst.msk [vmem:[#allocation2 + $0x10] sm:$0xff] %vm44, -inf
      %48 = vst.msk [vmem:[#allocation2 + $0x18] sm:$0xff] %vm44, -inf
      %49 = vst.msk [vmem:[#allocation2 + $0x20] sm:$0xff] %vm44, -inf
      %50 = vst.msk [vmem:[#allocation2 + $0x28] sm:$0xff] %vm44, -inf
      %51 = vst.msk [vmem:[#allocation2 + $0x30] sm:$0xff] %vm44, -inf
      %52 = vst.msk [vmem:[#allocation2 + $0x38] sm:$0xff] %vm44, -inf
      %53 = vst.msk [vmem:[#allocation3] sm:$0xff] %vm44, 0.0
      %54 = vst.msk [vmem:[#allocation3 + $0x8] sm:$0xff] %vm44, 0.0
      %55 = vst.msk [vmem:[#allocation3 + $0x10] sm:$0xff] %vm44, 0.0
      %56 = vst.msk [vmem:[#allocation3 + $0x18] sm:$0xff] %vm44, 0.0
      %57 = vst.msk [vmem:[#allocation3 + $0x20] sm:$0xff] %vm44, 0.0
      %58 = vst.msk [vmem:[#allocation3 + $0x28] sm:$0xff] %vm44, 0.0
      %59 = vst.msk [vmem:[#allocation3 + $0x30] sm:$0xff] %vm44, 0.0
      %60 = vst.msk [vmem:[#allocation3 + $0x38] sm:$0xff] %vm44, 0.0
      %61 = vst [vmem:[#allocation4] sm:$0xff] 0.0
      %62 = vst [vmem:[#allocation4 + $0x8] sm:$0xff] 0.0
      %63 = vst [vmem:[#allocation4 + $0x10] sm:$0xff] 0.0
      %64 = vst [vmem:[#allocation4 + $0x18] sm:$0xff] 0.0
      %65 = vst [vmem:[#allocation4 + $0x20] sm:$0xff] 0.0
      %66 = vst [vmem:[#allocation4 + $0x28] sm:$0xff] 0.0
      %67 = vst [vmem:[#allocation4 + $0x30] sm:$0xff] 0.0
      %68 = vst [vmem:[#allocation4 + $0x38] sm:$0xff] 0.0
      %69 = vst [vmem:[#allocation4 + $0x40] sm:$0xff] 0.0
      %70 = vst [vmem:[#allocation4 + $0x48] sm:$0xff] 0.0
      %71 = vst [vmem:[#allocation4 + $0x50] sm:$0xff] 0.0
      %72 = vst [vmem:[#allocation4 + $0x58] sm:$0xff] 0.0
      %73 = vst [vmem:[#allocation4 + $0x60] sm:$0xff] 0.0
      %74 = vst [vmem:[#allocation4 + $0x68] sm:$0xff] 0.0
      %75 = vst [vmem:[#allocation4 + $0x70] sm:$0xff] 0.0
      %76 = vst [vmem:[#allocation4 + $0x78] sm:$0xff] 0.0
    $region21: #{tpu_custom_call.1} parent=1 // pred_fallthru
      _
    %v77 = vld [vmem:[#allocation5] sm:$0xff]
    %v78 = vld [vmem:[#allocation5 + $0x8] sm:$0xff]
    %v79 = vld [vmem:[#allocation5 + $0x10] sm:$0xff]
    %v80 = vld [vmem:[#allocation5 + $0x18] sm:$0xff]
    %v81 = vld [vmem:[#allocation5 + $0x20] sm:$0xff]
    %v82 = vld [vmem:[#allocation5 + $0x28] sm:$0xff]
    %v83 = vld [vmem:[#allocation5 + $0x30] sm:$0xff]
    %v84 = vld [vmem:[#allocation5 + $0x38] sm:$0xff]
    %v85 = vld [vmem:[#allocation5 + $0x40] sm:$0xff]
    %v86 = vld [vmem:[#allocation5 + $0x48] sm:$0xff]
    %v87 = vld [vmem:[#allocation5 + $0x50] sm:$0xff]
    %v88 = vld [vmem:[#allocation5 + $0x58] sm:$0xff]
    %v89 = vld [vmem:[#allocation5 + $0x60] sm:$0xff]
    %v90 = vld [vmem:[#allocation5 + $0x68] sm:$0xff]
    %v91 = vld [vmem:[#allocation5 + $0x70] sm:$0xff]
    %v92 = vld [vmem:[#allocation5 + $0x78] sm:$0xff]
    %v93 = vmul.f32 %v77, 0.2
    %v94 = vmul.f32 %v78, 0.2
    %v95 = vmul.f32 %v79, 0.2
    %v96 = vmul.f32 %v80, 0.2
    %v97 = vmul.f32 %v81, 0.2
    %v98 = vmul.f32 %v82, 0.2
    %v99 = vmul.f32 %v83, 0.2
    %v100 = vmul.f32 %v84, 0.2
    %v101 = vmul.f32 %v85, 0.2
    %v102 = vmul.f32 %v86, 0.2
    %v103 = vmul.f32 %v87, 0.2
    %v104 = vmul.f32 %v88, 0.2
    %v105 = vmul.f32 %v89, 0.2
    %v106 = vmul.f32 %v90, 0.2
    %v107 = vmul.f32 %v91, 0.2
    %v108 = vmul.f32 %v92, 0.2
    %v109 = vpack.c.bf16 %v95, %v93
    %v110 = vpack.c.bf16 %v96, %v94
    %v111 = vpack.c.bf16 %v99, %v97
    %v112 = vpack.c.bf16 %v100, %v98
    %v113 = vpack.c.bf16 %v103, %v101
    %v114 = vpack.c.bf16 %v104, %v102
    %v115 = vpack.c.bf16 %v107, %v105
    %v116 = vpack.c.bf16 %v108, %v106
    %v117 = vld [vmem:[#allocation8] sm:$0xff]
    %v118 = vld [vmem:[#allocation8 + $0x8] sm:$0xff]
    %v119 = vld [vmem:[#allocation8 + $0x10] sm:$0xff]
    %v120 = vld [vmem:[#allocation8 + $0x18] sm:$0xff]
    %v121 = vld [vmem:[#allocation8 + $0x20] sm:$0xff]
    %v122 = vld [vmem:[#allocation8 + $0x28] sm:$0xff]
    %v123 = vld [vmem:[#allocation8 + $0x30] sm:$0xff]
    %v124 = vld [vmem:[#allocation8 + $0x38] sm:$0xff]
    %v125 = vld [vmem:[#allocation8 + $0x40] sm:$0xff]
    %v126 = vld [vmem:[#allocation8 + $0x48] sm:$0xff]
    %v127 = vld [vmem:[#allocation8 + $0x50] sm:$0xff]
    %v128 = vld [vmem:[#allocation8 + $0x58] sm:$0xff]
    %v129 = vld [vmem:[#allocation8 + $0x60] sm:$0xff]
    %v130 = vld [vmem:[#allocation8 + $0x68] sm:$0xff]
    %v131 = vld [vmem:[#allocation8 + $0x70] sm:$0xff]
    %v132 = vld [vmem:[#allocation8 + $0x78] sm:$0xff]
    %v133 = vld [vmem:[#allocation8 + $0x80] sm:$0xff]
    %v134 = vld [vmem:[#allocation8 + $0x88] sm:$0xff]
    %v135 = vld [vmem:[#allocation8 + $0x90] sm:$0xff]
    %v136 = vld [vmem:[#allocation8 + $0x98] sm:$0xff]
    %v137 = vld [vmem:[#allocation8 + $0xa0] sm:$0xff]
    %v138 = vld [vmem:[#allocation8 + $0xa8] sm:$0xff]
    %v139 = vld [vmem:[#allocation8 + $0xb0] sm:$0xff]
    %v140 = vld [vmem:[#allocation8 + $0xb8] sm:$0xff]
    %v141 = vld [vmem:[#allocation8 + $0xc0] sm:$0xff]
    %v142 = vld [vmem:[#allocation8 + $0xc8] sm:$0xff]
    %v143 = vld [vmem:[#allocation8 + $0xd0] sm:$0xff]
    %v144 = vld [vmem:[#allocation8 + $0xd8] sm:$0xff]
    %v145 = vld [vmem:[#allocation8 + $0xe0] sm:$0xff]
    %v146 = vld [vmem:[#allocation8 + $0xe8] sm:$0xff]
    %v147 = vld [vmem:[#allocation8 + $0xf0] sm:$0xff]
    %v148 = vld [vmem:[#allocation8 + $0xf8] sm:$0xff]
    %v149 = vld [vmem:[#allocation8 + $0x100] sm:$0xff]
    %v150 = vld [vmem:[#allocation8 + $0x108] sm:$0xff]
    %v151 = vld [vmem:[#allocation8 + $0x110] sm:$0xff]
    %v152 = vld [vmem:[#allocation8 + $0x118] sm:$0xff]
    %v153 = vld [vmem:[#allocation8 + $0x120] sm:$0xff]
    %v154 = vld [vmem:[#allocation8 + $0x128] sm:$0xff]
    %v155 = vld [vmem:[#allocation8 + $0x130] sm:$0xff]
    %v156 = vld [vmem:[#allocation8 + $0x138] sm:$0xff]
    %v157 = vld [vmem:[#allocation8 + $0x140] sm:$0xff]
    %v158 = vld [vmem:[#allocation8 + $0x148] sm:$0xff]
    %v159 = vld [vmem:[#allocation8 + $0x150] sm:$0xff]
    %v160 = vld [vmem:[#allocation8 + $0x158] sm:$0xff]
    %v161 = vld [vmem:[#allocation8 + $0x160] sm:$0xff]
    %v162 = vld [vmem:[#allocation8 + $0x168] sm:$0xff]
    %v163 = vld [vmem:[#allocation8 + $0x170] sm:$0xff]
    %v164 = vld [vmem:[#allocation8 + $0x178] sm:$0xff]
    %v165 = vld [vmem:[#allocation8 + $0x180] sm:$0xff]
    %v166 = vld [vmem:[#allocation8 + $0x188] sm:$0xff]
    %v167 = vld [vmem:[#allocation8 + $0x190] sm:$0xff]
    %v168 = vld [vmem:[#allocation8 + $0x198] sm:$0xff]
    %v169 = vld [vmem:[#allocation8 + $0x1a0] sm:$0xff]
    %v170 = vld [vmem:[#allocation8 + $0x1a8] sm:$0xff]
    %v171 = vld [vmem:[#allocation8 + $0x1b0] sm:$0xff]
    %v172 = vld [vmem:[#allocation8 + $0x1b8] sm:$0xff]
    %v173 = vld [vmem:[#allocation8 + $0x1c0] sm:$0xff]
    %v174 = vld [vmem:[#allocation8 + $0x1c8] sm:$0xff]
    %v175 = vld [vmem:[#allocation8 + $0x1d0] sm:$0xff]
    %v176 = vld [vmem:[#allocation8 + $0x1d8] sm:$0xff]
    %v177 = vld [vmem:[#allocation8 + $0x1e0] sm:$0xff]
    %v178 = vld [vmem:[#allocation8 + $0x1e8] sm:$0xff]
    %v179 = vld [vmem:[#allocation8 + $0x1f0] sm:$0xff]
    %v180 = vld [vmem:[#allocation8 + $0x1f8] sm:$0xff]
    %v181 = vpack.c.bf16 %v119, %v117
    %v182 = vpack.c.bf16 %v120, %v118
    %v183 = vpack.c.bf16 %v123, %v121
    %v184 = vpack.c.bf16 %v124, %v122
    %v185 = vpack.c.bf16 %v127, %v125
    %v186 = vpack.c.bf16 %v128, %v126
    %v187 = vpack.c.bf16 %v131, %v129
    %v188 = vpack.c.bf16 %v132, %v130
    %v189 = vpack.c.bf16 %v135, %v133
    %v190 = vpack.c.bf16 %v136, %v134
    %v191 = vpack.c.bf16 %v139, %v137
    %v192 = vpack.c.bf16 %v140, %v138
    %v193 = vpack.c.bf16 %v143, %v141
    %v194 = vpack.c.bf16 %v144, %v142
    %v195 = vpack.c.bf16 %v147, %v145
    %v196 = vpack.c.bf16 %v148, %v146
    %v197 = vpack.c.bf16 %v151, %v149
    %v198 = vpack.c.bf16 %v152, %v150
    %v199 = vpack.c.bf16 %v155, %v153
    %v200 = vpack.c.bf16 %v156, %v154
    %v201 = vpack.c.bf16 %v159, %v157
    %v202 = vpack.c.bf16 %v160, %v158
    %v203 = vpack.c.bf16 %v163, %v161
    %v204 = vpack.c.bf16 %v164, %v162
    %v205 = vpack.c.bf16 %v167, %v165
    %v206 = vpack.c.bf16 %v168, %v166
    %v207 = vpack.c.bf16 %v171, %v169
    %v208 = vpack.c.bf16 %v172, %v170
    %v209 = vpack.c.bf16 %v175, %v173
    %v210 = vpack.c.bf16 %v176, %v174
    %v211 = vpack.c.bf16 %v179, %v177
    %v212 = vpack.c.bf16 %v180, %v178
    %213 = vmatprep.subr.bf16.mxu0 %v196
    %214 = vmatpush1.bf16.xpose.msra.mxu0 %v195
    %215 = vmatprep.subr.bf16.mxu0 %v194
    %216 = vmatpush1.bf16.xpose.msra.mxu0 %v193
    %217 = vmatprep.subr.bf16.mxu0 %v192
    %218 = vmatpush1.bf16.xpose.msra.mxu0 %v191
    %219 = vmatprep.subr.bf16.mxu0 %v190
    %220 = vmatpush1.bf16.xpose.msra.mxu0 %v189
    %221 = vmatprep.subr.bf16.mxu0 %v188
    %222 = vmatpush1.bf16.xpose.msra.mxu0 %v187
    %223 = vmatprep.subr.bf16.mxu0 %v186
    %224 = vmatpush1.bf16.xpose.msra.mxu0 %v185
    %225 = vmatprep.subr.bf16.mxu0 %v184
    %226 = vmatpush1.bf16.xpose.msra.mxu0 %v183
    %227 = vmatprep.subr.bf16.mxu0 %v182
    %228 = vmatpush1.bf16.xpose.msra.mxu0 %v181
    %229 = vmatprep.subr.bf16.mxu0 %v212
    %230 = vmatpush2.bf16.xpose.msra.mxu0 %v211
    %231 = vmatprep.subr.bf16.mxu0 %v210
    %232 = vmatpush2.bf16.xpose.msra.mxu0 %v209
    %233 = vmatprep.subr.bf16.mxu0 %v208
    %234 = vmatpush2.bf16.xpose.msra.mxu0 %v207
    %235 = vmatprep.subr.bf16.mxu0 %v206
    %236 = vmatpush2.bf16.xpose.msra.mxu0 %v205
    %237 = vmatprep.subr.bf16.mxu0 %v204
    %238 = vmatpush2.bf16.xpose.msra.mxu0 %v203
    %239 = vmatprep.subr.bf16.mxu0 %v202
    %240 = vmatpush2.bf16.xpose.msra.mxu0 %v201
    %241 = vmatprep.subr.bf16.mxu0 %v200
    %242 = vmatpush2.bf16.xpose.msra.mxu0 %v199
    %243 = vmatprep.subr.bf16.mxu0 %v198
    %244 = vmatpush2.bf16.xpose.msra.mxu0 %v197
    %245 = vmatprep.mubr.bf16.mxu0 %v110
    %246 = vmatmul.mubr.bf16.gmra.mxu0 %v109
    %v247 = vpop.f32.mrf.mxu0
    %v248 = vadd.f32 0.0, %v247
    %v249 = vpop.f32.mrf.mxu0
    %v250 = vadd.f32 0.0, %v249
    %v251 = vpop.f32.mrf.mxu0
    %v252 = vadd.f32 0.0, %v251
    %v253 = vpop.f32.mrf.mxu0
    %v254 = vadd.f32 0.0, %v253
    %255 = vmatprep.mubr.bf16.mxu0 %v112
    %256 = vmatmul.mubr.bf16.gmra.mxu0 %v111
    %v257 = vpop.f32.mrf.mxu0
    %v258 = vadd.f32 0.0, %v257
    %v259 = vpop.f32.mrf.mxu0
    %v260 = vadd.f32 0.0, %v259
    %v261 = vpop.f32.mrf.mxu0
    %v262 = vadd.f32 0.0, %v261
    %v263 = vpop.f32.mrf.mxu0
    %v264 = vadd.f32 0.0, %v263
    %265 = vmatprep.mubr.bf16.mxu0 %v114
    %266 = vmatmul.mubr.bf16.gmra.mxu0 %v113
    %v267 = vpop.f32.mrf.mxu0
    %v268 = vadd.f32 0.0, %v267
    %v269 = vpop.f32.mrf.mxu0
    %v270 = vadd.f32 0.0, %v269
    %v271 = vpop.f32.mrf.mxu0
    %v272 = vadd.f32 0.0, %v271
    %v273 = vpop.f32.mrf.mxu0
    %v274 = vadd.f32 0.0, %v273
    %275 = vmatprep.mubr.bf16.mxu0 %v116
    %276 = vmatmul.mubr.bf16.gmra.mxu0 %v115
    %v277 = vpop.f32.mrf.mxu0
    %v278 = vadd.f32 0.0, %v277
    %v279 = vpop.f32.mrf.mxu0
    %v280 = vadd.f32 0.0, %v279
    %v281 = vpop.f32.mrf.mxu0
    %v282 = vadd.f32 0.0, %v281
    %v283 = vpop.f32.mrf.mxu0
    %v284 = vadd.f32 0.0, %v283
    %285 = vdwg.mxu0
    %v286 = vld [vmem:[#allocation2] sm:$0xff]
    %v287 = vld [vmem:[#allocation2 + $0x8] sm:$0xff]
    %v288 = vld [vmem:[#allocation2 + $0x10] sm:$0xff]
    %v289 = vld [vmem:[#allocation2 + $0x18] sm:$0xff]
    %v290 = vld [vmem:[#allocation2 + $0x20] sm:$0xff]
    %v291 = vld [vmem:[#allocation2 + $0x28] sm:$0xff]
    %v292 = vld [vmem:[#allocation2 + $0x30] sm:$0xff]
    %v293 = vld [vmem:[#allocation2 + $0x38] sm:$0xff]
    %v294 = vmax.f32 %v248, %v250
    %295 = vmax.xlane.f32.xlu0 %v294
    %v296 = vpop.xlane.xlu0 %295
    %v297 = vmax.f32 %v252, %v254
    %298 = vmax.xlane.f32.xlu0 %v297
    %v299 = vpop.xlane.xlu0 %298
    %v300 = vmax.f32 %v258, %v260
    %301 = vmax.xlane.f32.xlu0 %v300
    %v302 = vpop.xlane.xlu0 %301
    %v303 = vmax.f32 %v262, %v264
    %304 = vmax.xlane.f32.xlu0 %v303
    %v305 = vpop.xlane.xlu0 %304
    %v306 = vmax.f32 %v268, %v270
    %307 = vmax.xlane.f32.xlu0 %v306
    %v308 = vpop.xlane.xlu0 %307
    %v309 = vmax.f32 %v272, %v274
    %310 = vmax.xlane.f32.xlu0 %v309
    %v311 = vpop.xlane.xlu0 %310
    %v312 = vmax.f32 %v278, %v280
    %313 = vmax.xlane.f32.xlu0 %v312
    %v314 = vpop.xlane.xlu0 %313
    %v315 = vmax.f32 %v282, %v284
    %316 = vmax.xlane.f32.xlu0 %v315
    %v317 = vpop.xlane.xlu0 %316
    %v318 = vmax.f32 %v286, %v296
    %v319 = vmax.f32 %v287, %v299
    %v320 = vmax.f32 %v288, %v302
    %v321 = vmax.f32 %v289, %v305
    %v322 = vmax.f32 %v290, %v308
    %v323 = vmax.f32 %v291, %v311
    %v324 = vmax.f32 %v292, %v314
    %v325 = vmax.f32 %v293, %v317
    %v326 = vsub.f32 %v286, %v318
    %v327 = vsub.f32 %v287, %v319
    %v328 = vsub.f32 %v288, %v320
    %v329 = vsub.f32 %v289, %v321
    %v330 = vsub.f32 %v290, %v322
    %v331 = vsub.f32 %v291, %v323
    %v332 = vsub.f32 %v292, %v324
    %v333 = vsub.f32 %v293, %v325
    %v334 = vmul.f32 %v326, 1.442695
    %v335 = vpow.pop %v334
    %v336 = vmul.f32 %v327, 1.442695
    %v337 = vpow.pop %v336
    %v338 = vmul.f32 %v328, 1.442695
    %v339 = vpow.pop %v338
    %v340 = vmul.f32 %v329, 1.442695
    %v341 = vpow.pop %v340
    %v342 = vmul.f32 %v330, 1.442695
    %v343 = vpow.pop %v342
    %v344 = vmul.f32 %v331, 1.442695
    %v345 = vpow.pop %v344
    %v346 = vmul.f32 %v332, 1.442695
    %v347 = vpow.pop %v346
    %v348 = vmul.f32 %v333, 1.442695
    %v349 = vpow.pop %v348
    %351 = vset.pattern.permute.xlu0 0
    %352 = vperm.xlu0 %351, %v318
    %v353 = vpop.permute.xlu0 %352
    %356 = vset.pattern.permute.xlu0 0
    %357 = vperm.xlu0 %356, %v319
    %v358 = vpop.permute.xlu0 %357
    %361 = vset.pattern.permute.xlu0 0
    %362 = vperm.xlu0 %361, %v320
    %v363 = vpop.permute.xlu0 %362
    %366 = vset.pattern.permute.xlu0 0
    %367 = vperm.xlu0 %366, %v321
    %v368 = vpop.permute.xlu0 %367
    %371 = vset.pattern.permute.xlu0 0
    %372 = vperm.xlu0 %371, %v322
    %v373 = vpop.permute.xlu0 %372
    %376 = vset.pattern.permute.xlu0 0
    %377 = vperm.xlu0 %376, %v323
    %v378 = vpop.permute.xlu0 %377
    %381 = vset.pattern.permute.xlu0 0
    %382 = vperm.xlu0 %381, %v324
    %v383 = vpop.permute.xlu0 %382
    %386 = vset.pattern.permute.xlu0 0
    %387 = vperm.xlu0 %386, %v325
    %v388 = vpop.permute.xlu0 %387
    %v390 = vsub.f32 %v248, %v353
    %v391 = vsub.f32 %v250, %v353
    %v392 = vsub.f32 %v252, %v358
    %v393 = vsub.f32 %v254, %v358
    %v394 = vsub.f32 %v258, %v363
    %v395 = vsub.f32 %v260, %v363
    %v396 = vsub.f32 %v262, %v368
    %v397 = vsub.f32 %v264, %v368
    %v398 = vsub.f32 %v268, %v373
    %v399 = vsub.f32 %v270, %v373
    %v400 = vsub.f32 %v272, %v378
    %v401 = vsub.f32 %v274, %v378
    %v402 = vsub.f32 %v278, %v383
    %v403 = vsub.f32 %v280, %v383
    %v404 = vsub.f32 %v282, %v388
    %v405 = vsub.f32 %v284, %v388
    %v406 = vmul.f32 %v390, 1.442695
    %v407 = vpow.pop %v406
    %v408 = vmul.f32 %v391, 1.442695
    %v409 = vpow.pop %v408
    %v410 = vmul.f32 %v392, 1.442695
    %v411 = vpow.pop %v410
    %v412 = vmul.f32 %v393, 1.442695
    %v413 = vpow.pop %v412
    %v414 = vmul.f32 %v394, 1.442695
    %v415 = vpow.pop %v414
    %v416 = vmul.f32 %v395, 1.442695
    %v417 = vpow.pop %v416
    %v418 = vmul.f32 %v396, 1.442695
    %v419 = vpow.pop %v418
    %v420 = vmul.f32 %v397, 1.442695
    %v421 = vpow.pop %v420
    %v422 = vmul.f32 %v398, 1.442695
    %v423 = vpow.pop %v422
    %v424 = vmul.f32 %v399, 1.442695
    %v425 = vpow.pop %v424
    %v426 = vmul.f32 %v400, 1.442695
    %v427 = vpow.pop %v426
    %v428 = vmul.f32 %v401, 1.442695
    %v429 = vpow.pop %v428
    %v430 = vmul.f32 %v402, 1.442695
    %v431 = vpow.pop %v430
    %v432 = vmul.f32 %v403, 1.442695
    %v433 = vpow.pop %v432
    %v434 = vmul.f32 %v404, 1.442695
    %v435 = vpow.pop %v434
    %v436 = vmul.f32 %v405, 1.442695
    %v437 = vpow.pop %v436
    %v438 = vld [vmem:[#allocation3] sm:$0xff]
    %v439 = vld [vmem:[#allocation3 + $0x8] sm:$0xff]
    %v440 = vld [vmem:[#allocation3 + $0x10] sm:$0xff]
    %v441 = vld [vmem:[#allocation3 + $0x18] sm:$0xff]
    %v442 = vld [vmem:[#allocation3 + $0x20] sm:$0xff]
    %v443 = vld [vmem:[#allocation3 + $0x28] sm:$0xff]
    %v444 = vld [vmem:[#allocation3 + $0x30] sm:$0xff]
    %v445 = vld [vmem:[#allocation3 + $0x38] sm:$0xff]
    %v446 = vmul.f32 %v335, %v438
    %v447 = vmul.f32 %v337, %v439
    %v448 = vmul.f32 %v339, %v440
    %v449 = vmul.f32 %v341, %v441
    %v450 = vmul.f32 %v343, %v442
    %v451 = vmul.f32 %v345, %v443
    %v452 = vmul.f32 %v347, %v444
    %v453 = vmul.f32 %v349, %v445
    %v454 = vadd.f32 %v407, %v409
    %455 = vadd.xlane.f32.xlu0 %v454
    %v456 = vpop.xlane.xlu0 %455
    %v457 = vadd.f32 %v411, %v413
    %458 = vadd.xlane.f32.xlu0 %v457
    %v459 = vpop.xlane.xlu0 %458
    %v460 = vadd.f32 %v415, %v417
    %461 = vadd.xlane.f32.xlu0 %v460
    %v462 = vpop.xlane.xlu0 %461
    %v463 = vadd.f32 %v419, %v421
    %464 = vadd.xlane.f32.xlu0 %v463
    %v465 = vpop.xlane.xlu0 %464
    %v466 = vadd.f32 %v423, %v425
    %467 = vadd.xlane.f32.xlu0 %v466
    %v468 = vpop.xlane.xlu0 %467
    %v469 = vadd.f32 %v427, %v429
    %470 = vadd.xlane.f32.xlu0 %v469
    %v471 = vpop.xlane.xlu0 %470
    %v472 = vadd.f32 %v431, %v433
    %473 = vadd.xlane.f32.xlu0 %v472
    %v474 = vpop.xlane.xlu0 %473
    %v475 = vadd.f32 %v435, %v437
    %476 = vadd.xlane.f32.xlu0 %v475
    %v477 = vpop.xlane.xlu0 %476
    %v478 = vadd.f32 %v446, %v456
    %v479 = vadd.f32 %v447, %v459
    %v480 = vadd.f32 %v448, %v462
    %v481 = vadd.f32 %v449, %v465
    %v482 = vadd.f32 %v450, %v468
    %v483 = vadd.f32 %v451, %v471
    %v484 = vadd.f32 %v452, %v474
    %v485 = vadd.f32 %v453, %v477
    %vm486 = vcmask 7168
    %487 = vst.msk [vmem:[#allocation3] sm:$0xff] %vm486, %v478
    %488 = vst.msk [vmem:[#allocation3 + $0x8] sm:$0xff] %vm486, %v479
    %489 = vst.msk [vmem:[#allocation3 + $0x10] sm:$0xff] %vm486, %v480
    %490 = vst.msk [vmem:[#allocation3 + $0x18] sm:$0xff] %vm486, %v481
    %491 = vst.msk [vmem:[#allocation3 + $0x20] sm:$0xff] %vm486, %v482
    %492 = vst.msk [vmem:[#allocation3 + $0x28] sm:$0xff] %vm486, %v483
    %493 = vst.msk [vmem:[#allocation3 + $0x30] sm:$0xff] %vm486, %v484
    %494 = vst.msk [vmem:[#allocation3 + $0x38] sm:$0xff] %vm486, %v485
    %v495 = vld [vmem:[#allocation4] sm:$0xff]
    %v496 = vld [vmem:[#allocation4 + $0x8] sm:$0xff]
    %v497 = vld [vmem:[#allocation4 + $0x10] sm:$0xff]
    %v498 = vld [vmem:[#allocation4 + $0x18] sm:$0xff]
    %v499 = vld [vmem:[#allocation4 + $0x20] sm:$0xff]
    %v500 = vld [vmem:[#allocation4 + $0x28] sm:$0xff]
    %v501 = vld [vmem:[#allocation4 + $0x30] sm:$0xff]
    %v502 = vld [vmem:[#allocation4 + $0x38] sm:$0xff]
    %v503 = vld [vmem:[#allocation4 + $0x40] sm:$0xff]
    %v504 = vld [vmem:[#allocation4 + $0x48] sm:$0xff]
    %v505 = vld [vmem:[#allocation4 + $0x50] sm:$0xff]
    %v506 = vld [vmem:[#allocation4 + $0x58] sm:$0xff]
    %v507 = vld [vmem:[#allocation4 + $0x60] sm:$0xff]
    %v508 = vld [vmem:[#allocation4 + $0x68] sm:$0xff]
    %v509 = vld [vmem:[#allocation4 + $0x70] sm:$0xff]
    %v510 = vld [vmem:[#allocation4 + $0x78] sm:$0xff]
    %512 = vset.pattern.permute.xlu0 0
    %513 = vperm.xlu0 %512, %v335
    %v514 = vpop.permute.xlu0 %513
    %517 = vset.pattern.permute.xlu0 0
    %518 = vperm.xlu0 %517, %v337
    %v519 = vpop.permute.xlu0 %518
    %522 = vset.pattern.permute.xlu0 0
    %523 = vperm.xlu0 %522, %v339
    %v524 = vpop.permute.xlu0 %523
    %527 = vset.pattern.permute.xlu0 0
    %528 = vperm.xlu0 %527, %v341
    %v529 = vpop.permute.xlu0 %528
    %532 = vset.pattern.permute.xlu0 0
    %533 = vperm.xlu0 %532, %v343
    %v534 = vpop.permute.xlu0 %533
    %537 = vset.pattern.permute.xlu0 0
    %538 = vperm.xlu0 %537, %v345
    %v539 = vpop.permute.xlu0 %538
    %542 = vset.pattern.permute.xlu0 0
    %543 = vperm.xlu0 %542, %v347
    %v544 = vpop.permute.xlu0 %543
    %547 = vset.pattern.permute.xlu0 0
    %548 = vperm.xlu0 %547, %v349
    %v549 = vpop.permute.xlu0 %548
    %v551 = vmul.f32 %v514, %v495
    %v552 = vmul.f32 %v514, %v496
    %v553 = vmul.f32 %v519, %v497
    %v554 = vmul.f32 %v519, %v498
    %v555 = vmul.f32 %v524, %v499
    %v556 = vmul.f32 %v524, %v500
    %v557 = vmul.f32 %v529, %v501
    %v558 = vmul.f32 %v529, %v502
    %v559 = vmul.f32 %v534, %v503
    %v560 = vmul.f32 %v534, %v504
    %v561 = vmul.f32 %v539, %v505
    %v562 = vmul.f32 %v539, %v506
    %v563 = vmul.f32 %v544, %v507
    %v564 = vmul.f32 %v544, %v508
    %v565 = vmul.f32 %v549, %v509
    %v566 = vmul.f32 %v549, %v510
    %v567 = vpack.c.bf16 %v411, %v407
    %v568 = vpack.c.bf16 %v413, %v409
    %v569 = vpack.c.bf16 %v419, %v415
    %v570 = vpack.c.bf16 %v421, %v417
    %v571 = vpack.c.bf16 %v427, %v423
    %v572 = vpack.c.bf16 %v429, %v425
    %v573 = vpack.c.bf16 %v435, %v431
    %v574 = vpack.c.bf16 %v437, %v433
    %575 = vmatprep.subr.bf16.mxu0 %v196
    %576 = vmatpush1.bf16.msra.mxu0 %v195
    %577 = vmatprep.subr.bf16.mxu0 %v194
    %578 = vmatpush1.bf16.msra.mxu0 %v193
    %579 = vmatprep.subr.bf16.mxu0 %v192
    %580 = vmatpush1.bf16.msra.mxu0 %v191
    %581 = vmatprep.subr.bf16.mxu0 %v190
    %582 = vmatpush1.bf16.msra.mxu0 %v189
    %583 = vmatprep.subr.bf16.mxu0 %v188
    %584 = vmatpush1.bf16.msra.mxu0 %v187
    %585 = vmatprep.subr.bf16.mxu0 %v186
    %586 = vmatpush1.bf16.msra.mxu0 %v185
    %587 = vmatprep.subr.bf16.mxu0 %v184
    %588 = vmatpush1.bf16.msra.mxu0 %v183
    %589 = vmatprep.subr.bf16.mxu0 %v182
    %590 = vmatpush1.bf16.msra.mxu0 %v181
    %591 = vmatprep.subr.bf16.mxu0 %v212
    %592 = vmatpush2.bf16.msra.mxu0 %v211
    %593 = vmatprep.subr.bf16.mxu0 %v210
    %594 = vmatpush2.bf16.msra.mxu0 %v209
    %595 = vmatprep.subr.bf16.mxu0 %v208
    %596 = vmatpush2.bf16.msra.mxu0 %v207
    %597 = vmatprep.subr.bf16.mxu0 %v206
    %598 = vmatpush2.bf16.msra.mxu0 %v205
    %599 = vmatprep.subr.bf16.mxu0 %v204
    %600 = vmatpush2.bf16.msra.mxu0 %v203
    %601 = vmatprep.subr.bf16.mxu0 %v202
    %602 = vmatpush2.bf16.msra.mxu0 %v201
    %603 = vmatprep.subr.bf16.mxu0 %v200
    %604 = vmatpush2.bf16.msra.mxu0 %v199
    %605 = vmatprep.subr.bf16.mxu0 %v198
    %606 = vmatpush2.bf16.msra.mxu0 %v197
    %607 = vmatprep.mubr.bf16.mxu0 %v568
    %608 = vmatmul.mubr.bf16.gmra.mxu0 %v567
    %v609 = vpop.f32.mrf.mxu0
    %v610 = vadd.f32 0.0, %v609
    %v611 = vpop.f32.mrf.mxu0
    %v612 = vadd.f32 0.0, %v611
    %v613 = vpop.f32.mrf.mxu0
    %v614 = vadd.f32 0.0, %v613
    %v615 = vpop.f32.mrf.mxu0
    %v616 = vadd.f32 0.0, %v615
    %617 = vmatprep.mubr.bf16.mxu0 %v570
    %618 = vmatmul.mubr.bf16.gmra.mxu0 %v569
    %v619 = vpop.f32.mrf.mxu0
    %v620 = vadd.f32 0.0, %v619
    %v621 = vpop.f32.mrf.mxu0
    %v622 = vadd.f32 0.0, %v621
    %v623 = vpop.f32.mrf.mxu0
    %v624 = vadd.f32 0.0, %v623
    %v625 = vpop.f32.mrf.mxu0
    %v626 = vadd.f32 0.0, %v625
    %627 = vmatprep.mubr.bf16.mxu0 %v572
    %628 = vmatmul.mubr.bf16.gmra.mxu0 %v571
    %v629 = vpop.f32.mrf.mxu0
    %v630 = vadd.f32 0.0, %v629
    %v631 = vpop.f32.mrf.mxu0
    %v632 = vadd.f32 0.0, %v631
    %v633 = vpop.f32.mrf.mxu0
    %v634 = vadd.f32 0.0, %v633
    %v635 = vpop.f32.mrf.mxu0
    %v636 = vadd.f32 0.0, %v635
    %637 = vmatprep.mubr.bf16.mxu0 %v574
    %638 = vmatmul.mubr.bf16.gmra.mxu0 %v573
    %v639 = vpop.f32.mrf.mxu0
    %v640 = vadd.f32 0.0, %v639
    %v641 = vpop.f32.mrf.mxu0
    %v642 = vadd.f32 0.0, %v641
    %v643 = vpop.f32.mrf.mxu0
    %v644 = vadd.f32 0.0, %v643
    %v645 = vpop.f32.mrf.mxu0
    %v646 = vadd.f32 0.0, %v645
    %647 = vdwg.mxu0
    %v648 = vadd.f32 %v551, %v610
    %v649 = vadd.f32 %v552, %v612
    %v650 = vadd.f32 %v553, %v614
    %v651 = vadd.f32 %v554, %v616
    %v652 = vadd.f32 %v555, %v620
    %v653 = vadd.f32 %v556, %v622
    %v654 = vadd.f32 %v557, %v624
    %v655 = vadd.f32 %v558, %v626
    %v656 = vadd.f32 %v559, %v630
    %v657 = vadd.f32 %v560, %v632
    %v658 = vadd.f32 %v561, %v634
    %v659 = vadd.f32 %v562, %v636
    %v660 = vadd.f32 %v563, %v640
    %v661 = vadd.f32 %v564, %v642
    %v662 = vadd.f32 %v565, %v644
    %v663 = vadd.f32 %v566, %v646
    %664 = vst [vmem:[#allocation4] sm:$0xff] %v648
    %665 = vst [vmem:[#allocation4 + $0x8] sm:$0xff] %v649
    %666 = vst [vmem:[#allocation4 + $0x10] sm:$0xff] %v650
    %667 = vst [vmem:[#allocation4 + $0x18] sm:$0xff] %v651
    %668 = vst [vmem:[#allocation4 + $0x20] sm:$0xff] %v652
    %669 = vst [vmem:[#allocation4 + $0x28] sm:$0xff] %v653
    %670 = vst [vmem:[#allocation4 + $0x30] sm:$0xff] %v654
    %671 = vst [vmem:[#allocation4 + $0x38] sm:$0xff] %v655
    %672 = vst [vmem:[#allocation4 + $0x40] sm:$0xff] %v656
    %673 = vst [vmem:[#allocation4 + $0x48] sm:$0xff] %v657
    %674 = vst [vmem:[#allocation4 + $0x50] sm:$0xff] %v658
    %675 = vst [vmem:[#allocation4 + $0x58] sm:$0xff] %v659
    %676 = vst [vmem:[#allocation4 + $0x60] sm:$0xff] %v660
    %677 = vst [vmem:[#allocation4 + $0x68] sm:$0xff] %v661
    %678 = vst [vmem:[#allocation4 + $0x70] sm:$0xff] %v662
    %679 = vst [vmem:[#allocation4 + $0x78] sm:$0xff] %v663
    %680 = vst.msk [vmem:[#allocation2] sm:$0xff] %vm486, %v318
    %681 = vst.msk [vmem:[#allocation2 + $0x8] sm:$0xff] %vm486, %v319
    %682 = vst.msk [vmem:[#allocation2 + $0x10] sm:$0xff] %vm486, %v320
    %683 = vst.msk [vmem:[#allocation2 + $0x18] sm:$0xff] %vm486, %v321
    %684 = vst.msk [vmem:[#allocation2 + $0x20] sm:$0xff] %vm486, %v322
    %685 = vst.msk [vmem:[#allocation2 + $0x28] sm:$0xff] %vm486, %v323
    %686 = vst.msk [vmem:[#allocation2 + $0x30] sm:$0xff] %vm486, %v324
    %687 = vst.msk [vmem:[#allocation2 + $0x38] sm:$0xff] %vm486, %v325
    // Predicated region
    $region22: #{tpu_custom_call.1} parent=1 // pred_check
      %p688 = pneg %p40
    $region23: #{tpu_custom_call.1} parent=1 // pred_check_branch
      %690 = sbr.rel (%p688) target = $region25
    $region24: #{tpu_custom_call.1} parent=1 // pred_region
      %v691 = vld [vmem:[#allocation4] sm:$0xff]
      %v692 = vld [vmem:[#allocation4 + $0x8] sm:$0xff]
      %v693 = vld [vmem:[#allocation4 + $0x10] sm:$0xff]
      %v694 = vld [vmem:[#allocation4 + $0x18] sm:$0xff]
      %v695 = vld [vmem:[#allocation4 + $0x20] sm:$0xff]
      %v696 = vld [vmem:[#allocation4 + $0x28] sm:$0xff]
      %v697 = vld [vmem:[#allocation4 + $0x30] sm:$0xff]
      %v698 = vld [vmem:[#allocation4 + $0x38] sm:$0xff]
      %v699 = vld [vmem:[#allocation4 + $0x40] sm:$0xff]
      %v700 = vld [vmem:[#allocation4 + $0x48] sm:$0xff]
      %v701 = vld [vmem:[#allocation4 + $0x50] sm:$0xff]
      %v702 = vld [vmem:[#allocation4 + $0x58] sm:$0xff]
      %v703 = vld [vmem:[#allocation4 + $0x60] sm:$0xff]
      %v704 = vld [vmem:[#allocation4 + $0x68] sm:$0xff]
      %v705 = vld [vmem:[#allocation4 + $0x70] sm:$0xff]
      %v706 = vld [vmem:[#allocation4 + $0x78] sm:$0xff]
      %v707 = vld [vmem:[#allocation3] sm:$0xff]
      %v708 = vld [vmem:[#allocation3 + $0x8] sm:$0xff]
      %v709 = vld [vmem:[#allocation3 + $0x10] sm:$0xff]
      %v710 = vld [vmem:[#allocation3 + $0x18] sm:$0xff]
      %v711 = vld [vmem:[#allocation3 + $0x20] sm:$0xff]
      %v712 = vld [vmem:[#allocation3 + $0x28] sm:$0xff]
      %v713 = vld [vmem:[#allocation3 + $0x30] sm:$0xff]
      %v714 = vld [vmem:[#allocation3 + $0x38] sm:$0xff]
      %716 = vset.pattern.permute.xlu0 0
      %717 = vperm.xlu0 %716, %v707
      %v718 = vpop.permute.xlu0 %717
      %721 = vset.pattern.permute.xlu0 0
      %722 = vperm.xlu0 %721, %v708
      %v723 = vpop.permute.xlu0 %722
      %726 = vset.pattern.permute.xlu0 0
      %727 = vperm.xlu0 %726, %v709
      %v728 = vpop.permute.xlu0 %727
      %731 = vset.pattern.permute.xlu0 0
      %732 = vperm.xlu0 %731, %v710
      %v733 = vpop.permute.xlu0 %732
      %736 = vset.pattern.permute.xlu0 0
      %737 = vperm.xlu0 %736, %v711
      %v738 = vpop.permute.xlu0 %737
      %741 = vset.pattern.permute.xlu0 0
      %742 = vperm.xlu0 %741, %v712
      %v743 = vpop.permute.xlu0 %742
      %746 = vset.pattern.permute.xlu0 0
      %747 = vperm.xlu0 %746, %v713
      %v748 = vpop.permute.xlu0 %747
      %751 = vset.pattern.permute.xlu0 0
      %752 = vperm.xlu0 %751, %v714
      %v753 = vpop.permute.xlu0 %752
      %v755 = vrcp.pop %v718
      %v756 = vmul.f32 %v691, %v755
      %v757 = vmul.f32 %v692, %v755
      %v758 = vrcp.pop %v723
      %v759 = vmul.f32 %v693, %v758
      %v760 = vmul.f32 %v694, %v758
      %v761 = vrcp.pop %v728
      %v762 = vmul.f32 %v695, %v761
      %v763 = vmul.f32 %v696, %v761
      %v764 = vrcp.pop %v733
      %v765 = vmul.f32 %v697, %v764
      %v766 = vmul.f32 %v698, %v764
      %v767 = vrcp.pop %v738
      %v768 = vmul.f32 %v699, %v767
      %v769 = vmul.f32 %v700, %v767
      %v770 = vrcp.pop %v743
      %v771 = vmul.f32 %v701, %v770
      %v772 = vmul.f32 %v702, %v770
      %v773 = vrcp.pop %v748
      %v774 = vmul.f32 %v703, %v773
      %v775 = vmul.f32 %v704, %v773
      %v776 = vrcp.pop %v753
      %v777 = vmul.f32 %v705, %v776
      %v778 = vmul.f32 %v706, %v776
      %779 = vst [vmem:[#allocation10] sm:$0xff] %v756
      %780 = vst [vmem:[#allocation10 + $0x8] sm:$0xff] %v757
      %781 = vst [vmem:[#allocation10 + $0x10] sm:$0xff] %v759
      %782 = vst [vmem:[#allocation10 + $0x18] sm:$0xff] %v760
      %783 = vst [vmem:[#allocation10 + $0x20] sm:$0xff] %v762
      %784 = vst [vmem:[#allocation10 + $0x28] sm:$0xff] %v763
      %785 = vst [vmem:[#allocation10 + $0x30] sm:$0xff] %v765
      %786 = vst [vmem:[#allocation10 + $0x38] sm:$0xff] %v766
      %787 = vst [vmem:[#allocation10 + $0x40] sm:$0xff] %v768
      %788 = vst [vmem:[#allocation10 + $0x48] sm:$0xff] %v769
      %789 = vst [vmem:[#allocation10 + $0x50] sm:$0xff] %v771
      %790 = vst [vmem:[#allocation10 + $0x58] sm:$0xff] %v772
      %791 = vst [vmem:[#allocation10 + $0x60] sm:$0xff] %v774
      %792 = vst [vmem:[#allocation10 + $0x68] sm:$0xff] %v775
      %793 = vst [vmem:[#allocation10 + $0x70] sm:$0xff] %v777
      %794 = vst [vmem:[#allocation10 + $0x78] sm:$0xff] %v778
    $region25: #{tpu_custom_call.1} parent=1 // pred_fallthru
      _
    // Predicated region
    $region26: #{tpu_custom_call.1} parent=1 // pred_check
      _
    $region27: #{tpu_custom_call.1} parent=1 // pred_check_branch
      %796 = sbr.rel (0) target = $region29
    $region28: #{tpu_custom_call.1} parent=1 // pred_region
      %s798 = ssub.s32 2048, 2048
      %799 = vsyncadd [#allocation7], %s798
      %s800 = sshll.u32 [#allocation10], 4
      %s801 = int_to_ptr.vmem [resolvable:$true] %s800
      %806 = dma.vmem_to_hbm [thread:$0]  %s801, 2048, %s2, [#allocation7], 256, 256, 16
    $region29: #{tpu_custom_call.1} parent=1 // pred_fallthru
      _
    // Predicated region
    $region30: #{tpu_custom_call.1} parent=1 // pred_check
      _
    $region31: #{tpu_custom_call.1} parent=1 // pred_check_branch
      %808 = sbr.rel (0) target = $region33
    $region32: #{tpu_custom_call.1} parent=1 // pred_region
      %809 = dma.done [#allocation7], 2048
    $region33: #{tpu_custom_call.1} parent=1 // pred_fallthru
      _
    %810 = vsyncpa [#allocation6], 1
    %811 = vsyncpa [#allocation9], 1
    %812 = vsyncpa [#allocation7], 1

</llo_original>
